<compile_context>
chip_gen: v7x
topology: tpu7x:2x2x1
jax: 0.10.0
libtpu: 0.0.40
codegen_flags: <defaults>
</compile_context>

<pallas_src>
import functools
import math

import jax
import jax.numpy as jnp
from jax import lax
from jax.experimental import pallas as pl
from jax.experimental.pallas import tpu as pltpu


def _round_up(x, m):
    return (x + m - 1) // m * m


def _tile_bytes(shape, itemsize):
    """VMEM bytes for one buffer of `shape`, including (sublane, lane) padding."""
    *lead, s, l = shape
    sublane = 8 * max(1, 4 // itemsize)          # f32: 8, bf16: 16, int8: 32
    lead_sz = math.prod(lead) if lead else 1
    return lead_sz * _round_up(s, sublane) * _round_up(l, 128) * itemsize


def _pick_block_n(n, c, h, w, itemsize, *, budget, cap):
    """Largest divisor of n (<= cap) whose double-buffered in+out blocks fit `budget`."""
    per_img = 2 * 2 * _tile_bytes((1, c, h, w), itemsize)   # in + out, double-buffered
    # Keep the 1-D grid reasonably long so both v7x TensorCores get work.
    cap = min(cap, max(1, n // min(n, 8)))
    tb = int(max(1, min(cap, n, budget // max(per_img, 1))))
    while n % tb:
        tb -= 1
    return tb


def _random_shift_kernel(shift_ref, x_ref, o_ref, rowpad, *, pad, block_n):
    """shift_ref: SMEM int32 (2, N); x_ref/o_ref: (block_n, C, H, W); rowpad: (C, H+2p, W)."""
    _, C, H, W = o_ref.shape
    base = pl.program_id(0) * block_n
    two_pad = 2 * pad

    def body(k, carry):
        b = base + k
        # Out-of-range shifts would leave an output image unwritten; clamp defensively.
        sx = jnp.clip(shift_ref[0, b], 0, two_pad)   # width shift  (grid channel 0)
        sy = jnp.clip(shift_ref[1, b], 0, two_pad)   # height shift (grid channel 1)

        # --- fused replicate-pad along the height axis, in VMEM only ---
        rowpad[:, pad:pad + H, :] = x_ref[k]
        rowpad[:, 0:pad, :] = jnp.broadcast_to(x_ref[k, :, 0:1, :], (C, pad, W))
        rowpad[:, pad + H:, :] = jnp.broadcast_to(x_ref[k, :, H - 1:H, :], (C, pad, W))

        # --- row shift: one dynamic sublane slice (pure addressing) ---
        rows = rowpad[:, pl.ds(sy, H), :]            # (C, H, W)

        # --- column shift with edge replication: branch on the scalar shift; only
        #     one branch runs, and all slices inside a branch are static ---
        for s in range(two_pad + 1):
            dx = s - pad

            @pl.when(sx == s)
            def _(dx=dx):
                if dx == 0:
                    out = rows
                elif dx > 0:
                    right = jnp.broadcast_to(rows[:, :, W - 1:W], (C, H, dx))
                    out = jnp.concatenate([rows[:, :, dx:], right], axis=-1)
                else:
                    left = jnp.broadcast_to(rows[:, :, 0:1], (C, H, -dx))
                    out = jnp.concatenate([left, rows[:, :, :W + dx]], axis=-1)
                o_ref[k] = out.astype(o_ref.dtype)

        return carry

    lax.fori_loop(0, block_n, body, 0)


def random_shifts_aug(x, shift, pad, *, block_n=None):
    """x: (N, C, H, W); shift: (N, 2) int in [0, 2*pad]; returns (N, C, H, W)."""
    n, c, h, w = x.shape
    assert h == w, "RandomShiftsAug requires square images"
    itemsize = jnp.dtype(x.dtype).itemsize

    # Generation-aware VMEM budgeting (v7x has 64 MiB/TC; v5e/v6e have 128 MiB).
    try:
        vmem_cap = int(pltpu.get_tpu_info().vmem_capacity_bytes)
    except Exception:
        vmem_cap = 64 * 1024 * 1024
    small_vmem = vmem_cap <= 64 * 1024 * 1024
    block_budget = (28 if small_vmem else 80) * 1024 * 1024

    if block_n is None:
        block_n = _pick_block_n(n, c, h, w, itemsize, budget=block_budget, cap=32)
    assert n % block_n == 0, "batch tile must divide batch size"

    # vmem_limit derived from the real double-buffered footprint (lane/sublane padded),
    # so the limit can never be exceeded by under-counting.
    blk_bytes = 2 * 2 * _tile_bytes((block_n, c, h, w), itemsize)   # in+out, double-buffered
    scratch_bytes = _tile_bytes((c, h + 2 * pad, w), itemsize)
    vmem_limit = int(blk_bytes + scratch_bytes + 8 * 1024 * 1024)
    vmem_limit = max(16 * 1024 * 1024,
                     min(vmem_limit, (48 if small_vmem else 100) * 1024 * 1024))

    # (2, N) layout keeps the long axis last -> no SMEM padding blowup for large N.
    shift_t = shift.astype(jnp.int32).T

    kernel = functools.partial(_random_shift_kernel, pad=pad, block_n=block_n)
    return pl.pallas_call(
        kernel,
        out_shape=jax.ShapeDtypeStruct((n, c, h, w), x.dtype),
        grid_spec=pltpu.PrefetchScalarGridSpec(
            num_scalar_prefetch=1,            # shifts land in SMEM before the grid runs
            grid=(n // block_n,),
            in_specs=[pl.BlockSpec((block_n, c, h, w), lambda i, s: (i, 0, 0, 0))],
            out_specs=pl.BlockSpec((block_n, c, h, w), lambda i, s: (i, 0, 0, 0)),
            scratch_shapes=[pltpu.VMEM((c, h + 2 * pad, w), x.dtype)],
        ),
        compiler_params=pltpu.CompilerParams(
            dimension_semantics=("parallel",),   # batch blocks are independent
            vmem_limit_bytes=vmem_limit,
        ),
    )(shift_t, x)


if __name__ == "__main__":
    pad = 4
    key = jax.random.PRNGKey(0)
    kx, ks = jax.random.split(key)

    n, c, h, w = 2, 4, 16, 16
    x = jax.random.normal(kx, (n, c, h, w), dtype=jnp.float32)
    # torch.randint(0, 2*pad+1, (n,1,1,2)) equivalent, generated with JAX RNG.
    # TODO(synk): randomness source differs from torch by construction; shift semantics match.
    shift = jax.random.randint(ks, (n, 2), 0, 2 * pad + 1, dtype=jnp.int32)

    out = random_shifts_aug(x, shift, pad)
    out = jax.block_until_ready(out)

    # Pure-JAX reference: replicate pad + integer crop (what grid_sample reduces to).
    xp = jnp.pad(x, ((0, 0), (0, 0), (pad, pad), (pad, pad)), mode="edge")
    ref = jnp.stack([
        jax.lax.dynamic_slice(xp[b], (0, int(shift[b, 1]), int(shift[b, 0])), (c, h, w))
        for b in range(n)
    ])
    assert out.shape == (n, c, h, w)
    # Kernel is pure data movement -> bit-exact match expected.
    assert jnp.array_equal(out, ref), "Pallas kernel does not match reference"

    print("KERNEL_OK")
</pallas_src>

<mosaic_0001>
module attributes {stable_mosaic.version = 11 : i64} {
  func.func @_random_shift_kernel(%arg0: i32, %arg1: memref<2x2xi32, #tpu.memory_space<smem>>, %arg2: memref<1x4x16x16xf32, #tpu.memory_space<vmem>>, %arg3: memref<1x4x16x16xf32, #tpu.memory_space<vmem>>, %arg4: memref<4x24x16xf32, #tpu.memory_space<vmem>>) attributes {dimension_semantics = [#tpu.dimension_semantics<parallel>], iteration_bounds = array<i64: 2>, scalar_prefetch = 1 : i64, scratch_operands = 1 : i64, tpu.core_type = #tpu.core_type<tc>, window_params = [{transform_indices = @transform_0, window_bounds = array<i64: 1, 4, 16, 16>}, {transform_indices = @transform_1, window_bounds = array<i64: 1, 4, 16, 16>}]} {
    %c1_i32 = arith.constant 1 : i32
    %0 = arith.muli %arg0, %c1_i32 : i32
    %c0_i32 = arith.constant 0 : i32
    %1 = arith.addi %0, %c0_i32 : i32
    %c0 = arith.constant 0 : index
    %2 = arith.index_cast %1 : i32 to index
    %3 = memref.load %arg1[%c0, %2] : memref<2x2xi32, #tpu.memory_space<smem>>
    %c0_i32_0 = arith.constant 0 : i32
    %c8_i32 = arith.constant 8 : i32
    %4 = arith.maxsi %c0_i32_0, %3 : i32
    %5 = arith.minsi %c8_i32, %4 : i32
    %c1 = arith.constant 1 : index
    %6 = arith.index_cast %1 : i32 to index
    %7 = memref.load %arg1[%c1, %6] : memref<2x2xi32, #tpu.memory_space<smem>>
    %c0_i32_1 = arith.constant 0 : i32
    %c8_i32_2 = arith.constant 8 : i32
    %8 = arith.maxsi %c0_i32_1, %7 : i32
    %9 = arith.minsi %c8_i32_2, %8 : i32
    %10 = arith.index_cast %c0_i32 : i32 to index
    %c0_3 = arith.constant 0 : index
    %c0_4 = arith.constant 0 : index
    %c0_5 = arith.constant 0 : index
    %11 = vector.load %arg2[%10, %c0_3, %c0_4, %c0_5] : memref<1x4x16x16xf32, #tpu.memory_space<vmem>>, vector<1x4x16x16xf32>
    %12 = vector.shape_cast %11 : vector<1x4x16x16xf32> to vector<4x16x16xf32>
    %c0_6 = arith.constant 0 : index
    %c4 = arith.constant 4 : index
    %c0_7 = arith.constant 0 : index
    %13 = vector.load %arg4[%c0_6, %c4, %c0_7] : memref<4x24x16xf32, #tpu.memory_space<vmem>>, vector<4x16x16xf32>
    tpu.vector_store %arg4[%c0_6, %c4, %c0_7], %12 {strides = array<i32>} : memref<4x24x16xf32, #tpu.memory_space<vmem>>, vector<4x16x16xf32>,
    %14 = arith.index_cast %c0_i32 : i32 to index
    %c0_8 = arith.constant 0 : index
    %c0_9 = arith.constant 0 : index
    %c0_10 = arith.constant 0 : index
    %15 = vector.load %arg2[%14, %c0_8, %c0_9, %c0_10] : memref<1x4x16x16xf32, #tpu.memory_space<vmem>>, vector<1x4x1x16xf32>
    %16 = vector.shape_cast %15 : vector<1x4x1x16xf32> to vector<4x1x16xf32>
    %17 = vector.shape_cast %16 : vector<4x1x16xf32> to vector<4x1x16xf32>
    %18 = vector.broadcast %17 : vector<4x1x16xf32> to vector<4x4x16xf32>
    %c0_11 = arith.constant 0 : index
    %c0_12 = arith.constant 0 : index
    %c0_13 = arith.constant 0 : index
    %19 = vector.load %arg4[%c0_11, %c0_12, %c0_13] : memref<4x24x16xf32, #tpu.memory_space<vmem>>, vector<4x4x16xf32>
    tpu.vector_store %arg4[%c0_11, %c0_12, %c0_13], %18 {strides = array<i32>} : memref<4x24x16xf32, #tpu.memory_space<vmem>>, vector<4x4x16xf32>,
    %20 = arith.index_cast %c0_i32 : i32 to index
    %c0_14 = arith.constant 0 : index
    %c15 = arith.constant 15 : index
    %c0_15 = arith.constant 0 : index
    %21 = vector.load %arg2[%20, %c0_14, %c15, %c0_15] : memref<1x4x16x16xf32, #tpu.memory_space<vmem>>, vector<1x4x1x16xf32>
    %22 = vector.shape_cast %21 : vector<1x4x1x16xf32> to vector<4x1x16xf32>
    %23 = vector.shape_cast %22 : vector<4x1x16xf32> to vector<4x1x16xf32>
    %24 = vector.broadcast %23 : vector<4x1x16xf32> to vector<4x4x16xf32>
    %c0_16 = arith.constant 0 : index
    %c20 = arith.constant 20 : index
    %c0_17 = arith.constant 0 : index
    %25 = vector.load %arg4[%c0_16, %c20, %c0_17] : memref<4x24x16xf32, #tpu.memory_space<vmem>>, vector<4x4x16xf32>
    tpu.vector_store %arg4[%c0_16, %c20, %c0_17], %24 {strides = array<i32>} : memref<4x24x16xf32, #tpu.memory_space<vmem>>, vector<4x4x16xf32>,
    %c0_18 = arith.constant 0 : index
    %26 = arith.index_cast %9 : i32 to index
    %c0_19 = arith.constant 0 : index
    %27 = vector.load %arg4[%c0_18, %26, %c0_19] : memref<4x24x16xf32, #tpu.memory_space<vmem>>, vector<4x16x16xf32>
    %c0_i32_20 = arith.constant 0 : i32
    %28 = arith.cmpi eq, %5, %c0_i32_20 : i32
    %29 = arith.extui %28 : i1 to i32
    %c0_i32_21 = arith.constant 0 : i32
    %30 = arith.cmpi ne, %29, %c0_i32_21 : i32
    scf.if %30 {
      %55 = vector.extract_strided_slice %27 {offsets = [0, 0, 0], sizes = [4, 16, 1], strides = [1, 1, 1]} : vector<4x16x16xf32> to vector<4x16x1xf32>
      %56 = vector.shape_cast %55 : vector<4x16x1xf32> to vector<4x16x1xf32>
      %57 = vector.broadcast %56 : vector<4x16x1xf32> to vector<4x16x4xf32>
      %58 = vector.extract_strided_slice %27 {offsets = [0, 0, 0], sizes = [4, 16, 12], strides = [1, 1, 1]} : vector<4x16x16xf32> to vector<4x16x12xf32>
      %59 = tpu.concatenate %57, %58 in 2 : vector<4x16x4xf32>, vector<4x16x12xf32> -> vector<4x16x16xf32>
      %60 = arith.index_cast %c0_i32 : i32 to index
      %c0_33 = arith.constant 0 : index
      %c0_34 = arith.constant 0 : index
      %c0_35 = arith.constant 0 : index
      %61 = vector.load %arg3[%60, %c0_33, %c0_34, %c0_35] : memref<1x4x16x16xf32, #tpu.memory_space<vmem>>, vector<1x4x16x16xf32>
      %62 = vector.shape_cast %61 : vector<1x4x16x16xf32> to vector<4x16x16xf32>
      %63 = vector.shape_cast %59 : vector<4x16x16xf32> to vector<1x4x16x16xf32>
      tpu.vector_store %arg3[%60, %c0_33, %c0_34, %c0_35], %63 {strides = array<i32>} : memref<1x4x16x16xf32, #tpu.memory_space<vmem>>, vector<1x4x16x16xf32>,
    } else {
    }
    %c1_i32_22 = arith.constant 1 : i32
    %31 = arith.cmpi eq, %5, %c1_i32_22 : i32
    %32 = arith.extui %31 : i1 to i32
    %c0_i32_23 = arith.constant 0 : i32
    %33 = arith.cmpi ne, %32, %c0_i32_23 : i32
    scf.if %33 {
      %55 = vector.extract_strided_slice %27 {offsets = [0, 0, 0], sizes = [4, 16, 1], strides = [1, 1, 1]} : vector<4x16x16xf32> to vector<4x16x1xf32>
      %56 = vector.shape_cast %55 : vector<4x16x1xf32> to vector<4x16x1xf32>
      %57 = vector.broadcast %56 : vector<4x16x1xf32> to vector<4x16x3xf32>
      %58 = vector.extract_strided_slice %27 {offsets = [0, 0, 0], sizes = [4, 16, 13], strides = [1, 1, 1]} : vector<4x16x16xf32> to vector<4x16x13xf32>
      %59 = tpu.concatenate %57, %58 in 2 : vector<4x16x3xf32>, vector<4x16x13xf32> -> vector<4x16x16xf32>
      %60 = arith.index_cast %c0_i32 : i32 to index
      %c0_33 = arith.constant 0 : index
      %c0_34 = arith.constant 0 : index
      %c0_35 = arith.constant 0 : index
      %61 = vector.load %arg3[%60, %c0_33, %c0_34, %c0_35] : memref<1x4x16x16xf32, #tpu.memory_space<vmem>>, vector<1x4x16x16xf32>
      %62 = vector.shape_cast %61 : vector<1x4x16x16xf32> to vector<4x16x16xf32>
      %63 = vector.shape_cast %59 : vector<4x16x16xf32> to vector<1x4x16x16xf32>
      tpu.vector_store %arg3[%60, %c0_33, %c0_34, %c0_35], %63 {strides = array<i32>} : memref<1x4x16x16xf32, #tpu.memory_space<vmem>>, vector<1x4x16x16xf32>,
    } else {
    }
    %c2_i32 = arith.constant 2 : i32
    %34 = arith.cmpi eq, %5, %c2_i32 : i32
    %35 = arith.extui %34 : i1 to i32
    %c0_i32_24 = arith.constant 0 : i32
    %36 = arith.cmpi ne, %35, %c0_i32_24 : i32
    scf.if %36 {
      %55 = vector.extract_strided_slice %27 {offsets = [0, 0, 0], sizes = [4, 16, 1], strides = [1, 1, 1]} : vector<4x16x16xf32> to vector<4x16x1xf32>
      %56 = vector.shape_cast %55 : vector<4x16x1xf32> to vector<4x16x1xf32>
      %57 = vector.broadcast %56 : vector<4x16x1xf32> to vector<4x16x2xf32>
      %58 = vector.extract_strided_slice %27 {offsets = [0, 0, 0], sizes = [4, 16, 14], strides = [1, 1, 1]} : vector<4x16x16xf32> to vector<4x16x14xf32>
      %59 = tpu.concatenate %57, %58 in 2 : vector<4x16x2xf32>, vector<4x16x14xf32> -> vector<4x16x16xf32>
      %60 = arith.index_cast %c0_i32 : i32 to index
      %c0_33 = arith.constant 0 : index
      %c0_34 = arith.constant 0 : index
      %c0_35 = arith.constant 0 : index
      %61 = vector.load %arg3[%60, %c0_33, %c0_34, %c0_35] : memref<1x4x16x16xf32, #tpu.memory_space<vmem>>, vector<1x4x16x16xf32>
      %62 = vector.shape_cast %61 : vector<1x4x16x16xf32> to vector<4x16x16xf32>
      %63 = vector.shape_cast %59 : vector<4x16x16xf32> to vector<1x4x16x16xf32>
      tpu.vector_store %arg3[%60, %c0_33, %c0_34, %c0_35], %63 {strides = array<i32>} : memref<1x4x16x16xf32, #tpu.memory_space<vmem>>, vector<1x4x16x16xf32>,
    } else {
    }
    %c3_i32 = arith.constant 3 : i32
    %37 = arith.cmpi eq, %5, %c3_i32 : i32
    %38 = arith.extui %37 : i1 to i32
    %c0_i32_25 = arith.constant 0 : i32
    %39 = arith.cmpi ne, %38, %c0_i32_25 : i32
    scf.if %39 {
      %55 = vector.extract_strided_slice %27 {offsets = [0, 0, 0], sizes = [4, 16, 1], strides = [1, 1, 1]} : vector<4x16x16xf32> to vector<4x16x1xf32>
      %56 = vector.extract_strided_slice %27 {offsets = [0, 0, 0], sizes = [4, 16, 15], strides = [1, 1, 1]} : vector<4x16x16xf32> to vector<4x16x15xf32>
      %57 = tpu.concatenate %55, %56 in 2 : vector<4x16x1xf32>, vector<4x16x15xf32> -> vector<4x16x16xf32>
      %58 = arith.index_cast %c0_i32 : i32 to index
      %c0_33 = arith.constant 0 : index
      %c0_34 = arith.constant 0 : index
      %c0_35 = arith.constant 0 : index
      %59 = vector.load %arg3[%58, %c0_33, %c0_34, %c0_35] : memref<1x4x16x16xf32, #tpu.memory_space<vmem>>, vector<1x4x16x16xf32>
      %60 = vector.shape_cast %59 : vector<1x4x16x16xf32> to vector<4x16x16xf32>
      %61 = vector.shape_cast %57 : vector<4x16x16xf32> to vector<1x4x16x16xf32>
      tpu.vector_store %arg3[%58, %c0_33, %c0_34, %c0_35], %61 {strides = array<i32>} : memref<1x4x16x16xf32, #tpu.memory_space<vmem>>, vector<1x4x16x16xf32>,
    } else {
    }
    %c4_i32 = arith.constant 4 : i32
    %40 = arith.cmpi eq, %5, %c4_i32 : i32
    %41 = arith.extui %40 : i1 to i32
    %c0_i32_26 = arith.constant 0 : i32
    %42 = arith.cmpi ne, %41, %c0_i32_26 : i32
    scf.if %42 {
      %55 = arith.index_cast %c0_i32 : i32 to index
      %c0_33 = arith.constant 0 : index
      %c0_34 = arith.constant 0 : index
      %c0_35 = arith.constant 0 : index
      %56 = vector.load %arg3[%55, %c0_33, %c0_34, %c0_35] : memref<1x4x16x16xf32, #tpu.memory_space<vmem>>, vector<1x4x16x16xf32>
      %57 = vector.shape_cast %56 : vector<1x4x16x16xf32> to vector<4x16x16xf32>
      %58 = vector.shape_cast %27 : vector<4x16x16xf32> to vector<1x4x16x16xf32>
      tpu.vector_store %arg3[%55, %c0_33, %c0_34, %c0_35], %58 {strides = array<i32>} : memref<1x4x16x16xf32, #tpu.memory_space<vmem>>, vector<1x4x16x16xf32>,
    } else {
    }
    %c5_i32 = arith.constant 5 : i32
    %43 = arith.cmpi eq, %5, %c5_i32 : i32
    %44 = arith.extui %43 : i1 to i32
    %c0_i32_27 = arith.constant 0 : i32
    %45 = arith.cmpi ne, %44, %c0_i32_27 : i32
    scf.if %45 {
      %55 = vector.extract_strided_slice %27 {offsets = [0, 0, 15], sizes = [4, 16, 1], strides = [1, 1, 1]} : vector<4x16x16xf32> to vector<4x16x1xf32>
      %56 = vector.extract_strided_slice %27 {offsets = [0, 0, 1], sizes = [4, 16, 15], strides = [1, 1, 1]} : vector<4x16x16xf32> to vector<4x16x15xf32>
      %57 = tpu.concatenate %56, %55 in 2 : vector<4x16x15xf32>, vector<4x16x1xf32> -> vector<4x16x16xf32>
      %58 = arith.index_cast %c0_i32 : i32 to index
      %c0_33 = arith.constant 0 : index
      %c0_34 = arith.constant 0 : index
      %c0_35 = arith.constant 0 : index
      %59 = vector.load %arg3[%58, %c0_33, %c0_34, %c0_35] : memref<1x4x16x16xf32, #tpu.memory_space<vmem>>, vector<1x4x16x16xf32>
      %60 = vector.shape_cast %59 : vector<1x4x16x16xf32> to vector<4x16x16xf32>
      %61 = vector.shape_cast %57 : vector<4x16x16xf32> to vector<1x4x16x16xf32>
      tpu.vector_store %arg3[%58, %c0_33, %c0_34, %c0_35], %61 {strides = array<i32>} : memref<1x4x16x16xf32, #tpu.memory_space<vmem>>, vector<1x4x16x16xf32>,
    } else {
    }
    %c6_i32 = arith.constant 6 : i32
    %46 = arith.cmpi eq, %5, %c6_i32 : i32
    %47 = arith.extui %46 : i1 to i32
    %c0_i32_28 = arith.constant 0 : i32
    %48 = arith.cmpi ne, %47, %c0_i32_28 : i32
    scf.if %48 {
      %55 = vector.extract_strided_slice %27 {offsets = [0, 0, 15], sizes = [4, 16, 1], strides = [1, 1, 1]} : vector<4x16x16xf32> to vector<4x16x1xf32>
      %56 = vector.shape_cast %55 : vector<4x16x1xf32> to vector<4x16x1xf32>
      %57 = vector.broadcast %56 : vector<4x16x1xf32> to vector<4x16x2xf32>
      %58 = vector.extract_strided_slice %27 {offsets = [0, 0, 2], sizes = [4, 16, 14], strides = [1, 1, 1]} : vector<4x16x16xf32> to vector<4x16x14xf32>
      %59 = tpu.concatenate %58, %57 in 2 : vector<4x16x14xf32>, vector<4x16x2xf32> -> vector<4x16x16xf32>
      %60 = arith.index_cast %c0_i32 : i32 to index
      %c0_33 = arith.constant 0 : index
      %c0_34 = arith.constant 0 : index
      %c0_35 = arith.constant 0 : index
      %61 = vector.load %arg3[%60, %c0_33, %c0_34, %c0_35] : memref<1x4x16x16xf32, #tpu.memory_space<vmem>>, vector<1x4x16x16xf32>
      %62 = vector.shape_cast %61 : vector<1x4x16x16xf32> to vector<4x16x16xf32>
      %63 = vector.shape_cast %59 : vector<4x16x16xf32> to vector<1x4x16x16xf32>
      tpu.vector_store %arg3[%60, %c0_33, %c0_34, %c0_35], %63 {strides = array<i32>} : memref<1x4x16x16xf32, #tpu.memory_space<vmem>>, vector<1x4x16x16xf32>,
    } else {
    }
    %c7_i32 = arith.constant 7 : i32
    %49 = arith.cmpi eq, %5, %c7_i32 : i32
    %50 = arith.extui %49 : i1 to i32
    %c0_i32_29 = arith.constant 0 : i32
    %51 = arith.cmpi ne, %50, %c0_i32_29 : i32
    scf.if %51 {
      %55 = vector.extract_strided_slice %27 {offsets = [0, 0, 15], sizes = [4, 16, 1], strides = [1, 1, 1]} : vector<4x16x16xf32> to vector<4x16x1xf32>
      %56 = vector.shape_cast %55 : vector<4x16x1xf32> to vector<4x16x1xf32>
      %57 = vector.broadcast %56 : vector<4x16x1xf32> to vector<4x16x3xf32>
      %58 = vector.extract_strided_slice %27 {offsets = [0, 0, 3], sizes = [4, 16, 13], strides = [1, 1, 1]} : vector<4x16x16xf32> to vector<4x16x13xf32>
      %59 = tpu.concatenate %58, %57 in 2 : vector<4x16x13xf32>, vector<4x16x3xf32> -> vector<4x16x16xf32>
      %60 = arith.index_cast %c0_i32 : i32 to index
      %c0_33 = arith.constant 0 : index
      %c0_34 = arith.constant 0 : index
      %c0_35 = arith.constant 0 : index
      %61 = vector.load %arg3[%60, %c0_33, %c0_34, %c0_35] : memref<1x4x16x16xf32, #tpu.memory_space<vmem>>, vector<1x4x16x16xf32>
      %62 = vector.shape_cast %61 : vector<1x4x16x16xf32> to vector<4x16x16xf32>
      %63 = vector.shape_cast %59 : vector<4x16x16xf32> to vector<1x4x16x16xf32>
      tpu.vector_store %arg3[%60, %c0_33, %c0_34, %c0_35], %63 {strides = array<i32>} : memref<1x4x16x16xf32, #tpu.memory_space<vmem>>, vector<1x4x16x16xf32>,
    } else {
    }
    %c8_i32_30 = arith.constant 8 : i32
    %52 = arith.cmpi eq, %5, %c8_i32_30 : i32
    %53 = arith.extui %52 : i1 to i32
    %c0_i32_31 = arith.constant 0 : i32
    %54 = arith.cmpi ne, %53, %c0_i32_31 : i32
    scf.if %54 {
      %55 = vector.extract_strided_slice %27 {offsets = [0, 0, 15], sizes = [4, 16, 1], strides = [1, 1, 1]} : vector<4x16x16xf32> to vector<4x16x1xf32>
      %56 = vector.shape_cast %55 : vector<4x16x1xf32> to vector<4x16x1xf32>
      %57 = vector.broadcast %56 : vector<4x16x1xf32> to vector<4x16x4xf32>
      %58 = vector.extract_strided_slice %27 {offsets = [0, 0, 4], sizes = [4, 16, 12], strides = [1, 1, 1]} : vector<4x16x16xf32> to vector<4x16x12xf32>
      %59 = tpu.concatenate %58, %57 in 2 : vector<4x16x12xf32>, vector<4x16x4xf32> -> vector<4x16x16xf32>
      %60 = arith.index_cast %c0_i32 : i32 to index
      %c0_33 = arith.constant 0 : index
      %c0_34 = arith.constant 0 : index
      %c0_35 = arith.constant 0 : index
      %61 = vector.load %arg3[%60, %c0_33, %c0_34, %c0_35] : memref<1x4x16x16xf32, #tpu.memory_space<vmem>>, vector<1x4x16x16xf32>
      %62 = vector.shape_cast %61 : vector<1x4x16x16xf32> to vector<4x16x16xf32>
      %63 = vector.shape_cast %59 : vector<4x16x16xf32> to vector<1x4x16x16xf32>
      tpu.vector_store %arg3[%60, %c0_33, %c0_34, %c0_35], %63 {strides = array<i32>} : memref<1x4x16x16xf32, #tpu.memory_space<vmem>>, vector<1x4x16x16xf32>,
    } else {
    }
    %c1_i32_32 = arith.constant 1 : i32
    return
  }
  func.func @transform_0(%arg0: i32, %arg1: memref<2x2xi32, #tpu.memory_space<smem>>) -> (i32, i32, i32, i32) {
    %c0_i32 = arith.constant 0 : i32
    %c0_i32_0 = arith.constant 0 : i32
    %c0_i32_1 = arith.constant 0 : i32
    %c0_i32_2 = arith.constant 0 : i32
    return %arg0, %c0_i32, %c0_i32_0, %c0_i32_1 : i32, i32, i32, i32
  }
  func.func @transform_1(%arg0: i32, %arg1: memref<2x2xi32, #tpu.memory_space<smem>>) -> (i32, i32, i32, i32) {
    %c0_i32 = arith.constant 0 : i32
    %c0_i32_0 = arith.constant 0 : i32
    %c0_i32_1 = arith.constant 0 : i32
    %c0_i32_2 = arith.constant 0 : i32
    return %arg0, %c0_i32, %c0_i32_0, %c0_i32_1 : i32, i32, i32, i32
  }
}

</mosaic_0001>

<llo_original>
// kernel: tpu_custom_call.1
$region0: #{tpu_custom_call.1}
  #allocation0 [shape = 'u32[]', space=smem, size = 0x4, offset = 0x4, fixed_abs, tag = 'smem constant byte address 0x4 - core index']
  #allocation1 [shape = 'u32[144,128]{1,0:T(1,128)}', space=vmem, size = 0x12000, scoped, tag = 'internal scratch']
  #allocation2 [shape = 'f32[4,24,16]{2,1,0:T(8,128)}', space=vmem, size = 0xc000, scoped, tag = 'scratch operand']
  #allocation3 [shape = 's32[1]{0}', space=sflag, size = 0x4, scoped, tag = 'scoped memory for tpu_custom_call.1']
  #allocation4 [shape = 'u8[1024]{0}', space=smem, size = 0x400, scoped, tag = 'prefetched SMEM operand 0']
  %s0 = inlined_call_operand.hbm [shape: s32[2,2], index: 0, kind: input, shape index: {}]
  %s1 = inlined_call_operand.hbm [shape: f32[2,4,16,16], index: 1, kind: input, shape index: {}]
  %s2 = inlined_call_operand.hbm [shape: f32[2,4,16,16], index: 2, kind: output, shape index: {}]
  %s3 = sld [smem:[#allocation0]]
  $region77: #{tpu_custom_call.1} parent=0
    _
  %s5 = ssub.s32 1, %s3
  %s6 = scalar_select 0, %s5, %s3
  %8 = dma.hbm_to_smem %s0, 32, [#allocation4], [#allocation3]
  %9 = dma.done [#allocation3], 32
  %10 = sfence
  $region1: #{tpu_custom_call.1} parent=0
    #allocation5 [shape = 'u8[65536]{0}', space=vmem, size = 0x10000, scoped, tag = 'input window, operand 1']
    #allocation6 [shape = 's32[2]{0}', space=sflag, size = 0x8, scoped, tag = 'scoped memory for tpu_custom_call.1']
    #allocation7 [shape = 's32[2]{0}', space=sflag, size = 0x8, scoped, tag = 'scoped memory for tpu_custom_call.1']
    #allocation8 [shape = 'u8[65536]{0}', space=vmem, size = 0x10000, scoped, tag = 'output window, operand 0']
    %11 = vsyncpa [#allocation6], 0
    %s12 = scalar_lea.sflag [#allocation6], 1
    %13 = vsyncpa %s12, 0
    %14 = vsyncpa [#allocation7], 0
    %s15 = scalar_lea.sflag [#allocation7], 1
    %16 = vsyncpa %s15, 0
    loop: start=0, step=1, limit=4
    $region2: #{tpu_custom_call.1} parent=1 // loop_pre_header
      _
    $region3: #{tpu_custom_call.1} parent=1 // loop_header
      %s18 = sphi 0, %s22
      %p19 = scmp.ge.s32.totalorder %s18, 4
      %s28 = sphi 0, %s30
      %s31 = sphi 0, %s28
      %s32 = sphi 0, %s31
      %s48 = sphi 0, %s32
      %s54 = sphi 0, %s56
      %s57 = sphi 0, %s54
      %s58 = sphi 0, %s57
      %s74 = sphi 0, %s58
    $region4: #{tpu_custom_call.1} parent=1 // loop_header_branch
      %21 = sbr.rel (%p19) target = $region8
    $region5: #{tpu_custom_call.1} parent=1 // loop_body
      %s23 = ssub.s32 %s18, 1
      %s24 = ssub.s32 %s18, 2
      %s25 = sadd.s32 %s18, 1
      %s26 = ssub.s32 %s18, %s25
      %p27 = scmp.eq.s32.totalorder %s26, 0
      %s29 = sadd.s32 %s28, 1
      %s30 = scalar_select %p27, %s28, %s29
      %p33 = pneg %p27
      %p34 = scmp.eq.s32.totalorder %s18, 1
      %p35 = por %p33, %p34
      %p36 = scmp.ne.s32.totalorder %s28, %s31
      %p37 = scmp.eq.s32.totalorder %s18, 0
      %p38 = por %p36, %p37
      %p39 = scmp.ne.s32.totalorder %s28, %s31
      %p40 = scmp.eq.s32.totalorder %s23, 1
      %p41 = por %p39, %p40
      %p42 = scmp.ne.s32.totalorder %s31, %s32
      %p43 = scmp.eq.s32.totalorder %s23, 0
      %p44 = por %p42, %p43
      %p45 = scmp.ne.s32.totalorder %s31, %s32
      %p46 = scmp.eq.s32.totalorder %s24, 1
      %p47 = por %p45, %p46
      %p49 = scmp.ne.s32.totalorder %s32, %s48
      %p50 = scmp.eq.s32.totalorder %s24, 0
      %p51 = por %p49, %p50
      %s52 = ssub.s32 %s18, %s25
      %p53 = scmp.eq.s32.totalorder %s52, 0
      %s55 = sadd.s32 %s54, 1
      %s56 = scalar_select %p53, %s54, %s55
      %p59 = pneg %p53
      %p60 = scmp.eq.s32.totalorder %s18, 1
      %p61 = por %p59, %p60
      %p62 = scmp.ne.s32.totalorder %s54, %s57
      %p63 = scmp.eq.s32.totalorder %s18, 0
      %p64 = por %p62, %p63
      %p65 = scmp.ne.s32.totalorder %s54, %s57
      %p66 = scmp.eq.s32.totalorder %s23, 1
      %p67 = por %p65, %p66
      %p68 = scmp.ne.s32.totalorder %s57, %s58
      %p69 = scmp.eq.s32.totalorder %s23, 0
      %p70 = por %p68, %p69
      %p71 = scmp.ne.s32.totalorder %s57, %s58
      %p72 = scmp.eq.s32.totalorder %s24, 1
      %p73 = por %p71, %p72
      %p75 = scmp.ne.s32.totalorder %s58, %s74
      %p76 = scmp.eq.s32.totalorder %s24, 0
      %p77 = por %p75, %p76
      %p78 = scmp.le.s32.totalorder 1, %s18
      %p79 = scmp.lt.s32.totalorder %s18, 3
      %p80 = pnand %p78, %p79
      %p81 = pneg %p80
      // Predicated region
      $region9: #{tpu_custom_call.1} parent=5 // pred_check
        _
      $region10: #{tpu_custom_call.1} parent=5 // pred_check_branch
        %83 = sbr.rel (%p80) target = $region12
      $region11: #{tpu_custom_call.1} parent=5 // pred_region
        %s84 = ssub.s32 %s18, 1
      $region12: #{tpu_custom_call.1} parent=5 // pred_fallthru
        _
      %p85 = scmp.lt.s32.totalorder %s18, 2
      // Predicated region
      $region13: #{tpu_custom_call.1} parent=5 // pred_check
        %p86 = pneg %p85
      $region14: #{tpu_custom_call.1} parent=5 // pred_check_branch
        %88 = sbr.rel (%p86) target = $region16
      $region15: #{tpu_custom_call.1} parent=5 // pred_region
        // Predicated region
        $region17: #{tpu_custom_call.1} parent=15 // pred_check
          %p89 = pneg %p38
        $region18: #{tpu_custom_call.1} parent=15 // pred_check_branch
          %91 = sbr.rel (%p89) target = $region20
        $region19: #{tpu_custom_call.1} parent=15 // pred_region
          %s92 = sand.u32 %s28, 1
          %s93 = scalar_lea.sflag [#allocation6], %s92
          %s94 = sand.u32 %s28, 1
          %s95 = smul.addr %s94, 64
          %s96 = scalar_lea.vmem [#allocation5], %s95
          %s98 = ssub.s32 1024, 1024
          %99 = vsyncadd %s93, %s98
          %s100 = smul.addr %s18, 8
          %s101 = smul.addr %s100, 128
          %s102 = scalar_lea.hbm %s1, %s101
          %s103 = sshll.u32 %s96, 4
          %s104 = int_to_ptr.vmem [resolvable:$true] %s103
          %109 = dma.hbm_to_vmem [thread:$0]  %s102, 1024, %s104, %s93, 128, 128, 8
        $region20: #{tpu_custom_call.1} parent=15 // pred_fallthru
          _
      $region16: #{tpu_custom_call.1} parent=5 // pred_fallthru
        _
      %p110 = scmp.le.s32.totalorder 1, %s18
      %p111 = scmp.lt.s32.totalorder %s18, 3
      %p112 = pnand %p110, %p111
      %p113 = pneg %p112
      // Predicated region
      $region21: #{tpu_custom_call.1} parent=5 // pred_check
        _
      $region22: #{tpu_custom_call.1} parent=5 // pred_check_branch
        %115 = sbr.rel (%p112) target = $region24
      $region23: #{tpu_custom_call.1} parent=5 // pred_region
        %s116 = ssub.s32 %s18, 1
        %s117 = sand.u32 %s31, 1
        %s118 = scalar_lea.sflag [#allocation6], %s117
        %s119 = sand.u32 %s31, 1
        %s120 = smul.addr %s119, 64
        %s121 = scalar_lea.vmem [#allocation5], %s120
        // Predicated region
        $region25: #{tpu_custom_call.1} parent=23 // pred_check
          %p122 = pneg %p44
        $region26: #{tpu_custom_call.1} parent=23 // pred_check_branch
          %124 = sbr.rel (%p122) target = $region28
        $region27: #{tpu_custom_call.1} parent=23 // pred_region
          %125 = dma.done %s118, 1024
        $region28: #{tpu_custom_call.1} parent=23 // pred_fallthru
          _
        %s126 = sand.u32 %s31, 1
        %s127 = scalar_lea.sflag [#allocation6], %s126
        %s128 = sand.u32 %s31, 1
        %s129 = smul.addr %s128, 64
        %s130 = scalar_lea.vmem [#allocation5], %s129
        %p131 = pneg %p44
        %p132 = pneg %p41
        %p133 = pneg %p70
        %p134 = pneg %p67
        %s135 = sand.u32 %s57, 1
        %s136 = scalar_lea.sflag [#allocation7], %s135
        %s137 = sand.u32 %s57, 1
        %s138 = smul.addr %s137, 64
        %s139 = scalar_lea.vmem [#allocation8], %s138
        %s140 = sld [smem:[#allocation4 + %s23]]
        %p141 = scmp.gt.s32.totalorder %s140, 0
        %s142 = scalar_select %p141, %s140, 0
        %p143 = scmp.lt.s32.totalorder %s142, 8
        %s144 = scalar_select %p143, %s142, 8
        %s145 = sshra.s32 %s23, 7
        %s146 = sand.u32 %s23, 127
        %s147 = sadd.s32 %s145, 1
        %s148 = smul.u32 %s147, 128
        %s149 = sshra.s32 %s23, 7
        %s150 = sand.u32 %s23, 127
        %s151 = sadd.s32 %s148, %s150
        %s152 = sld [smem:[#allocation4 + %s151]]
        %p153 = scmp.gt.s32.totalorder %s152, 0
        %s154 = scalar_select %p153, %s152, 0
        %p155 = scmp.lt.s32.totalorder %s154, 8
        %s156 = scalar_select %p155, %s154, 8
        %v157 = vld [vmem:[%s121] sm:$0xff]
        %v158 = vld [vmem:[%s121 + $0x8] sm:$0xff]
        %v159 = vld [vmem:[%s121 + $0x10] sm:$0xff]
        %v160 = vld [vmem:[%s121 + $0x18] sm:$0xff]
        %v161 = vld [vmem:[%s121 + $0x20] sm:$0xff]
        %v162 = vld [vmem:[%s121 + $0x28] sm:$0xff]
        %v163 = vld [vmem:[%s121 + $0x30] sm:$0xff]
        %v164 = vld [vmem:[%s121 + $0x38] sm:$0xff]
        %vm165 = vcmask 130048
        %166 = vst.msk [vmem:[#allocation2 + $0x4] sm:$0xff] %vm165, %v157
        %167 = vst.msk [vmem:[#allocation2 + $0xc] sm:$0xff] %vm165, %v158
        %168 = vst.msk [vmem:[#allocation2 + $0x1c] sm:$0xff] %vm165, %v159
        %169 = vst.msk [vmem:[#allocation2 + $0x24] sm:$0xff] %vm165, %v160
        %170 = vst.msk [vmem:[#allocation2 + $0x34] sm:$0xff] %vm165, %v161
        %171 = vst.msk [vmem:[#allocation2 + $0x3c] sm:$0xff] %vm165, %v162
        %172 = vst.msk [vmem:[#allocation2 + $0x4c] sm:$0xff] %vm165, %v163
        %173 = vst.msk [vmem:[#allocation2 + $0x54] sm:$0xff] %vm165, %v164
        %v174 = vld [vmem:[%s121] sm:$0x1]
        %v175 = vld [vmem:[%s121 + $0x10] sm:$0x1]
        %v176 = vld [vmem:[%s121 + $0x20] sm:$0x1]
        %v177 = vld [vmem:[%s121 + $0x30] sm:$0x1]
        %v178 = vlaneseq
        %v179 = vshrl.u32 %v178, 7
        %v180 = vsub.s32 0, %v179
        %v181 = vrot.slane %v174, %v180
        %v182 = vlaneseq
        %v183 = vshrl.u32 %v182, 7
        %v184 = vsub.s32 0, %v183
        %v185 = vrot.slane %v175, %v184
        %v186 = vlaneseq
        %v187 = vshrl.u32 %v186, 7
        %v188 = vsub.s32 0, %v187
        %v189 = vrot.slane %v176, %v188
        %v190 = vlaneseq
        %v191 = vshrl.u32 %v190, 7
        %v192 = vsub.s32 0, %v191
        %v193 = vrot.slane %v177, %v192
        %vm194 = vcmask 125952
        %195 = vst.msk [vmem:[#allocation2] sm:$0xf] %vm194, %v181
        %196 = vst.msk [vmem:[#allocation2 + $0x18] sm:$0xf] %vm194, %v185
        %197 = vst.msk [vmem:[#allocation2 + $0x30] sm:$0xf] %vm194, %v189
        %198 = vst.msk [vmem:[#allocation2 + $0x48] sm:$0xf] %vm194, %v193
        %v199 = vld [vmem:[%s121 + $0xf] sm:$0x1]
        %v200 = vld [vmem:[%s121 + $0x1f] sm:$0x1]
        %v201 = vld [vmem:[%s121 + $0x2f] sm:$0x1]
        %v202 = vld [vmem:[%s121 + $0x3f] sm:$0x1]
        %v203 = vlaneseq
        %v204 = vshrl.u32 %v203, 7
        %v205 = vsub.s32 0, %v204
        %v206 = vrot.slane %v199, %v205
        %v207 = vlaneseq
        %v208 = vshrl.u32 %v207, 7
        %v209 = vsub.s32 0, %v208
        %v210 = vrot.slane %v200, %v209
        %v211 = vlaneseq
        %v212 = vshrl.u32 %v211, 7
        %v213 = vsub.s32 0, %v212
        %v214 = vrot.slane %v201, %v213
        %v215 = vlaneseq
        %v216 = vshrl.u32 %v215, 7
        %v217 = vsub.s32 0, %v216
        %v218 = vrot.slane %v202, %v217
        %219 = vst.msk [vmem:[#allocation2 + $0x14] sm:$0xf] %vm194, %v206
        %220 = vst.msk [vmem:[#allocation2 + $0x2c] sm:$0xf] %vm194, %v210
        %221 = vst.msk [vmem:[#allocation2 + $0x44] sm:$0xf] %vm194, %v214
        %222 = vst.msk [vmem:[#allocation2 + $0x5c] sm:$0xf] %vm194, %v218
        %s223 = scalar_lea.vmem [#allocation2], %s156
        %v224 = vld [vmem:[%s223] sm:$0xff]
        %v225 = vld [vmem:[%s223 + $0x8] sm:$0xff]
        %v226 = vld [vmem:[%s223 + $0x18] sm:$0xff]
        %v227 = vld [vmem:[%s223 + $0x20] sm:$0xff]
        %v228 = vld [vmem:[%s223 + $0x30] sm:$0xff]
        %v229 = vld [vmem:[%s223 + $0x38] sm:$0xff]
        %v230 = vld [vmem:[%s223 + $0x48] sm:$0xff]
        %v231 = vld [vmem:[%s223 + $0x50] sm:$0xff]
        %p232 = scmp.eq.s32.totalorder %s144, 0
        // Predicated region
        $region29: #{tpu_custom_call.1} parent=23 // pred_check
          %p233 = pneg %p232
        $region30: #{tpu_custom_call.1} parent=23 // pred_check_branch
          %235 = sbr.rel (%p233) target = $region32
        $region31: #{tpu_custom_call.1} parent=23 // pred_region
          %237 = vset.pattern.permute.xlu0 0
          %238 = vperm.xlu0 %237, %v224
          %v239 = vpop.permute.xlu0 %238
          %242 = vset.pattern.permute.xlu0 0
          %243 = vperm.xlu0 %242, %v225
          %v244 = vpop.permute.xlu0 %243
          %247 = vset.pattern.permute.xlu0 0
          %248 = vperm.xlu0 %247, %v226
          %v249 = vpop.permute.xlu0 %248
          %252 = vset.pattern.permute.xlu0 0
          %253 = vperm.xlu0 %252, %v227
          %v254 = vpop.permute.xlu0 %253
          %257 = vset.pattern.permute.xlu0 0
          %258 = vperm.xlu0 %257, %v228
          %v259 = vpop.permute.xlu0 %258
          %262 = vset.pattern.permute.xlu0 0
          %263 = vperm.xlu0 %262, %v229
          %v264 = vpop.permute.xlu0 %263
          %267 = vset.pattern.permute.xlu0 0
          %268 = vperm.xlu0 %267, %v230
          %v269 = vpop.permute.xlu0 %268
          %272 = vset.pattern.permute.xlu0 0
          %273 = vperm.xlu0 %272, %v231
          %v274 = vpop.permute.xlu0 %273
          %276 = vrot.lane.b32.xlu0 %v224, 4
          %v277 = vpop.permute.xlu0 %276
          %278 = vrot.lane.b32.xlu0 %v225, 4
          %v279 = vpop.permute.xlu0 %278
          %280 = vrot.lane.b32.xlu0 %v226, 4
          %v281 = vpop.permute.xlu0 %280
          %282 = vrot.lane.b32.xlu0 %v227, 4
          %v283 = vpop.permute.xlu0 %282
          %284 = vrot.lane.b32.xlu0 %v228, 4
          %v285 = vpop.permute.xlu0 %284
          %286 = vrot.lane.b32.xlu0 %v229, 4
          %v287 = vpop.permute.xlu0 %286
          %288 = vrot.lane.b32.xlu0 %v230, 4
          %v289 = vpop.permute.xlu0 %288
          %290 = vrot.lane.b32.xlu0 %v231, 4
          %v291 = vpop.permute.xlu0 %290
          %vm300 = vcmask 31744
          %v301 = vsel %vm300, %v239, %v277
          %v302 = vsel %vm300, %v244, %v279
          %v303 = vsel %vm300, %v249, %v281
          %v304 = vsel %vm300, %v254, %v283
          %v305 = vsel %vm300, %v259, %v285
          %v306 = vsel %vm300, %v264, %v287
          %v307 = vsel %vm300, %v269, %v289
          %v308 = vsel %vm300, %v274, %v291
          %309 = vst.msk [vmem:[%s139] sm:$0xff] %vm165, %v301
          %310 = vst.msk [vmem:[%s139 + $0x8] sm:$0xff] %vm165, %v302
          %311 = vst.msk [vmem:[%s139 + $0x10] sm:$0xff] %vm165, %v303
          %312 = vst.msk [vmem:[%s139 + $0x18] sm:$0xff] %vm165, %v304
          %313 = vst.msk [vmem:[%s139 + $0x20] sm:$0xff] %vm165, %v305
          %314 = vst.msk [vmem:[%s139 + $0x28] sm:$0xff] %vm165, %v306
          %315 = vst.msk [vmem:[%s139 + $0x30] sm:$0xff] %vm165, %v307
          %316 = vst.msk [vmem:[%s139 + $0x38] sm:$0xff] %vm165, %v308
        $region32: #{tpu_custom_call.1} parent=23 // pred_fallthru
          _
        %p317 = scmp.eq.s32.totalorder %s144, 1
        // Predicated region
        $region33: #{tpu_custom_call.1} parent=23 // pred_check
          %p318 = pneg %p317
        $region34: #{tpu_custom_call.1} parent=23 // pred_check_branch
          %320 = sbr.rel (%p318) target = $region36
        $region35: #{tpu_custom_call.1} parent=23 // pred_region
          %322 = vset.pattern.permute.xlu0 0
          %323 = vperm.xlu0 %322, %v224
          %v324 = vpop.permute.xlu0 %323
          %327 = vset.pattern.permute.xlu0 0
          %328 = vperm.xlu0 %327, %v225
          %v329 = vpop.permute.xlu0 %328
          %332 = vset.pattern.permute.xlu0 0
          %333 = vperm.xlu0 %332, %v226
          %v334 = vpop.permute.xlu0 %333
          %337 = vset.pattern.permute.xlu0 0
          %338 = vperm.xlu0 %337, %v227
          %v339 = vpop.permute.xlu0 %338
          %342 = vset.pattern.permute.xlu0 0
          %343 = vperm.xlu0 %342, %v228
          %v344 = vpop.permute.xlu0 %343
          %347 = vset.pattern.permute.xlu0 0
          %348 = vperm.xlu0 %347, %v229
          %v349 = vpop.permute.xlu0 %348
          %352 = vset.pattern.permute.xlu0 0
          %353 = vperm.xlu0 %352, %v230
          %v354 = vpop.permute.xlu0 %353
          %357 = vset.pattern.permute.xlu0 0
          %358 = vperm.xlu0 %357, %v231
          %v359 = vpop.permute.xlu0 %358
          %361 = vrot.lane.b32.xlu0 %v224, 3
          %v362 = vpop.permute.xlu0 %361
          %363 = vrot.lane.b32.xlu0 %v225, 3
          %v364 = vpop.permute.xlu0 %363
          %365 = vrot.lane.b32.xlu0 %v226, 3
          %v366 = vpop.permute.xlu0 %365
          %367 = vrot.lane.b32.xlu0 %v227, 3
          %v368 = vpop.permute.xlu0 %367
          %369 = vrot.lane.b32.xlu0 %v228, 3
          %v370 = vpop.permute.xlu0 %369
          %371 = vrot.lane.b32.xlu0 %v229, 3
          %v372 = vpop.permute.xlu0 %371
          %373 = vrot.lane.b32.xlu0 %v230, 3
          %v374 = vpop.permute.xlu0 %373
          %375 = vrot.lane.b32.xlu0 %v231, 3
          %v376 = vpop.permute.xlu0 %375
          %vm385 = vcmask 23552
          %v386 = vsel %vm385, %v324, %v362
          %v387 = vsel %vm385, %v329, %v364
          %v388 = vsel %vm385, %v334, %v366
          %v389 = vsel %vm385, %v339, %v368
          %v390 = vsel %vm385, %v344, %v370
          %v391 = vsel %vm385, %v349, %v372
          %v392 = vsel %vm385, %v354, %v374
          %v393 = vsel %vm385, %v359, %v376
          %394 = vst.msk [vmem:[%s139] sm:$0xff] %vm165, %v386
          %395 = vst.msk [vmem:[%s139 + $0x8] sm:$0xff] %vm165, %v387
          %396 = vst.msk [vmem:[%s139 + $0x10] sm:$0xff] %vm165, %v388
          %397 = vst.msk [vmem:[%s139 + $0x18] sm:$0xff] %vm165, %v389
          %398 = vst.msk [vmem:[%s139 + $0x20] sm:$0xff] %vm165, %v390
          %399 = vst.msk [vmem:[%s139 + $0x28] sm:$0xff] %vm165, %v391
          %400 = vst.msk [vmem:[%s139 + $0x30] sm:$0xff] %vm165, %v392
          %401 = vst.msk [vmem:[%s139 + $0x38] sm:$0xff] %vm165, %v393
        $region36: #{tpu_custom_call.1} parent=23 // pred_fallthru
          _
        %p402 = scmp.eq.s32.totalorder %s144, 2
        // Predicated region
        $region37: #{tpu_custom_call.1} parent=23 // pred_check
          %p403 = pneg %p402
        $region38: #{tpu_custom_call.1} parent=23 // pred_check_branch
          %405 = sbr.rel (%p403) target = $region40
        $region39: #{tpu_custom_call.1} parent=23 // pred_region
          %407 = vset.pattern.permute.xlu0 0
          %408 = vperm.xlu0 %407, %v224
          %v409 = vpop.permute.xlu0 %408
          %412 = vset.pattern.permute.xlu0 0
          %413 = vperm.xlu0 %412, %v225
          %v414 = vpop.permute.xlu0 %413
          %417 = vset.pattern.permute.xlu0 0
          %418 = vperm.xlu0 %417, %v226
          %v419 = vpop.permute.xlu0 %418
          %422 = vset.pattern.permute.xlu0 0
          %423 = vperm.xlu0 %422, %v227
          %v424 = vpop.permute.xlu0 %423
          %427 = vset.pattern.permute.xlu0 0
          %428 = vperm.xlu0 %427, %v228
          %v429 = vpop.permute.xlu0 %428
          %432 = vset.pattern.permute.xlu0 0
          %433 = vperm.xlu0 %432, %v229
          %v434 = vpop.permute.xlu0 %433
          %437 = vset.pattern.permute.xlu0 0
          %438 = vperm.xlu0 %437, %v230
          %v439 = vpop.permute.xlu0 %438
          %442 = vset.pattern.permute.xlu0 0
          %443 = vperm.xlu0 %442, %v231
          %v444 = vpop.permute.xlu0 %443
          %446 = vrot.lane.b32.xlu0 %v224, 2
          %v447 = vpop.permute.xlu0 %446
          %448 = vrot.lane.b32.xlu0 %v225, 2
          %v449 = vpop.permute.xlu0 %448
          %450 = vrot.lane.b32.xlu0 %v226, 2
          %v451 = vpop.permute.xlu0 %450
          %452 = vrot.lane.b32.xlu0 %v227, 2
          %v453 = vpop.permute.xlu0 %452
          %454 = vrot.lane.b32.xlu0 %v228, 2
          %v455 = vpop.permute.xlu0 %454
          %456 = vrot.lane.b32.xlu0 %v229, 2
          %v457 = vpop.permute.xlu0 %456
          %458 = vrot.lane.b32.xlu0 %v230, 2
          %v459 = vpop.permute.xlu0 %458
          %460 = vrot.lane.b32.xlu0 %v231, 2
          %v461 = vpop.permute.xlu0 %460
          %vm470 = vcmask 15360
          %v471 = vsel %vm470, %v409, %v447
          %v472 = vsel %vm470, %v414, %v449
          %v473 = vsel %vm470, %v419, %v451
          %v474 = vsel %vm470, %v424, %v453
          %v475 = vsel %vm470, %v429, %v455
          %v476 = vsel %vm470, %v434, %v457
          %v477 = vsel %vm470, %v439, %v459
          %v478 = vsel %vm470, %v444, %v461
          %479 = vst.msk [vmem:[%s139] sm:$0xff] %vm165, %v471
          %480 = vst.msk [vmem:[%s139 + $0x8] sm:$0xff] %vm165, %v472
          %481 = vst.msk [vmem:[%s139 + $0x10] sm:$0xff] %vm165, %v473
          %482 = vst.msk [vmem:[%s139 + $0x18] sm:$0xff] %vm165, %v474
          %483 = vst.msk [vmem:[%s139 + $0x20] sm:$0xff] %vm165, %v475
          %484 = vst.msk [vmem:[%s139 + $0x28] sm:$0xff] %vm165, %v476
          %485 = vst.msk [vmem:[%s139 + $0x30] sm:$0xff] %vm165, %v477
          %486 = vst.msk [vmem:[%s139 + $0x38] sm:$0xff] %vm165, %v478
        $region40: #{tpu_custom_call.1} parent=23 // pred_fallthru
          _
        %p487 = scmp.eq.s32.totalorder %s144, 3
        // Predicated region
        $region41: #{tpu_custom_call.1} parent=23 // pred_check
          %p488 = pneg %p487
        $region42: #{tpu_custom_call.1} parent=23 // pred_check_branch
          %490 = sbr.rel (%p488) target = $region44
        $region43: #{tpu_custom_call.1} parent=23 // pred_region
          %499 = vrot.lane.b32.xlu0 %v224, 1
          %v500 = vpop.permute.xlu0 %499
          %501 = vrot.lane.b32.xlu0 %v225, 1
          %v502 = vpop.permute.xlu0 %501
          %503 = vrot.lane.b32.xlu0 %v226, 1
          %v504 = vpop.permute.xlu0 %503
          %505 = vrot.lane.b32.xlu0 %v227, 1
          %v506 = vpop.permute.xlu0 %505
          %507 = vrot.lane.b32.xlu0 %v228, 1
          %v508 = vpop.permute.xlu0 %507
          %509 = vrot.lane.b32.xlu0 %v229, 1
          %v510 = vpop.permute.xlu0 %509
          %511 = vrot.lane.b32.xlu0 %v230, 1
          %v512 = vpop.permute.xlu0 %511
          %513 = vrot.lane.b32.xlu0 %v231, 1
          %v514 = vpop.permute.xlu0 %513
          %vm523 = vcmask 7168
          %v524 = vsel %vm523, %v224, %v500
          %v525 = vsel %vm523, %v225, %v502
          %v526 = vsel %vm523, %v226, %v504
          %v527 = vsel %vm523, %v227, %v506
          %v528 = vsel %vm523, %v228, %v508
          %v529 = vsel %vm523, %v229, %v510
          %v530 = vsel %vm523, %v230, %v512
          %v531 = vsel %vm523, %v231, %v514
          %532 = vst.msk [vmem:[%s139] sm:$0xff] %vm165, %v524
          %533 = vst.msk [vmem:[%s139 + $0x8] sm:$0xff] %vm165, %v525
          %534 = vst.msk [vmem:[%s139 + $0x10] sm:$0xff] %vm165, %v526
          %535 = vst.msk [vmem:[%s139 + $0x18] sm:$0xff] %vm165, %v527
          %536 = vst.msk [vmem:[%s139 + $0x20] sm:$0xff] %vm165, %v528
          %537 = vst.msk [vmem:[%s139 + $0x28] sm:$0xff] %vm165, %v529
          %538 = vst.msk [vmem:[%s139 + $0x30] sm:$0xff] %vm165, %v530
          %539 = vst.msk [vmem:[%s139 + $0x38] sm:$0xff] %vm165, %v531
        $region44: #{tpu_custom_call.1} parent=23 // pred_fallthru
          _
        %p540 = scmp.eq.s32.totalorder %s144, 4
        // Predicated region
        $region45: #{tpu_custom_call.1} parent=23 // pred_check
          %p541 = pneg %p540
        $region46: #{tpu_custom_call.1} parent=23 // pred_check_branch
          %543 = sbr.rel (%p541) target = $region48
        $region47: #{tpu_custom_call.1} parent=23 // pred_region
          %544 = vst.msk [vmem:[%s139] sm:$0xff] %vm165, %v224
          %545 = vst.msk [vmem:[%s139 + $0x8] sm:$0xff] %vm165, %v225
          %546 = vst.msk [vmem:[%s139 + $0x10] sm:$0xff] %vm165, %v226
          %547 = vst.msk [vmem:[%s139 + $0x18] sm:$0xff] %vm165, %v227
          %548 = vst.msk [vmem:[%s139 + $0x20] sm:$0xff] %vm165, %v228
          %549 = vst.msk [vmem:[%s139 + $0x28] sm:$0xff] %vm165, %v229
          %550 = vst.msk [vmem:[%s139 + $0x30] sm:$0xff] %vm165, %v230
          %551 = vst.msk [vmem:[%s139 + $0x38] sm:$0xff] %vm165, %v231
        $region48: #{tpu_custom_call.1} parent=23 // pred_fallthru
          _
        %p552 = scmp.eq.s32.totalorder %s144, 5
        // Predicated region
        $region49: #{tpu_custom_call.1} parent=23 // pred_check
          %p553 = pneg %p552
        $region50: #{tpu_custom_call.1} parent=23 // pred_check_branch
          %555 = sbr.rel (%p553) target = $region52
        $region51: #{tpu_custom_call.1} parent=23 // pred_region
          %564 = vrot.lane.b32.xlu0 %v224, 127
          %v565 = vpop.permute.xlu0 %564
          %566 = vrot.lane.b32.xlu0 %v225, 127
          %v567 = vpop.permute.xlu0 %566
          %568 = vrot.lane.b32.xlu0 %v226, 127
          %v569 = vpop.permute.xlu0 %568
          %570 = vrot.lane.b32.xlu0 %v227, 127
          %v571 = vpop.permute.xlu0 %570
          %572 = vrot.lane.b32.xlu0 %v228, 127
          %v573 = vpop.permute.xlu0 %572
          %574 = vrot.lane.b32.xlu0 %v229, 127
          %v575 = vpop.permute.xlu0 %574
          %576 = vrot.lane.b32.xlu0 %v230, 127
          %v577 = vpop.permute.xlu0 %576
          %578 = vrot.lane.b32.xlu0 %v231, 127
          %v579 = vpop.permute.xlu0 %578
          %vm588 = vcmask 121856
          %v589 = vsel %vm588, %v565, %v224
          %v590 = vsel %vm588, %v567, %v225
          %v591 = vsel %vm588, %v569, %v226
          %v592 = vsel %vm588, %v571, %v227
          %v593 = vsel %vm588, %v573, %v228
          %v594 = vsel %vm588, %v575, %v229
          %v595 = vsel %vm588, %v577, %v230
          %v596 = vsel %vm588, %v579, %v231
          %597 = vst.msk [vmem:[%s139] sm:$0xff] %vm165, %v589
          %598 = vst.msk [vmem:[%s139 + $0x8] sm:$0xff] %vm165, %v590
          %599 = vst.msk [vmem:[%s139 + $0x10] sm:$0xff] %vm165, %v591
          %600 = vst.msk [vmem:[%s139 + $0x18] sm:$0xff] %vm165, %v592
          %601 = vst.msk [vmem:[%s139 + $0x20] sm:$0xff] %vm165, %v593
          %602 = vst.msk [vmem:[%s139 + $0x28] sm:$0xff] %vm165, %v594
          %603 = vst.msk [vmem:[%s139 + $0x30] sm:$0xff] %vm165, %v595
          %604 = vst.msk [vmem:[%s139 + $0x38] sm:$0xff] %vm165, %v596
        $region52: #{tpu_custom_call.1} parent=23 // pred_fallthru
          _
        %p605 = scmp.eq.s32.totalorder %s144, 6
        // Predicated region
        $region53: #{tpu_custom_call.1} parent=23 // pred_check
          %p606 = pneg %p605
        $region54: #{tpu_custom_call.1} parent=23 // pred_check_branch
          %608 = sbr.rel (%p606) target = $region56
        $region55: #{tpu_custom_call.1} parent=23 // pred_region
          %610 = vset.pattern.permute.xlu0 15
          %611 = vperm.xlu0 %610, %v224
          %v612 = vpop.permute.xlu0 %611
          %615 = vset.pattern.permute.xlu0 15
          %616 = vperm.xlu0 %615, %v225
          %v617 = vpop.permute.xlu0 %616
          %620 = vset.pattern.permute.xlu0 15
          %621 = vperm.xlu0 %620, %v226
          %v622 = vpop.permute.xlu0 %621
          %625 = vset.pattern.permute.xlu0 15
          %626 = vperm.xlu0 %625, %v227
          %v627 = vpop.permute.xlu0 %626
          %630 = vset.pattern.permute.xlu0 15
          %631 = vperm.xlu0 %630, %v228
          %v632 = vpop.permute.xlu0 %631
          %635 = vset.pattern.permute.xlu0 15
          %636 = vperm.xlu0 %635, %v229
          %v637 = vpop.permute.xlu0 %636
          %640 = vset.pattern.permute.xlu0 15
          %641 = vperm.xlu0 %640, %v230
          %v642 = vpop.permute.xlu0 %641
          %645 = vset.pattern.permute.xlu0 15
          %646 = vperm.xlu0 %645, %v231
          %v647 = vpop.permute.xlu0 %646
          %649 = vrot.lane.b32.xlu0 %v224, 126
          %v650 = vpop.permute.xlu0 %649
          %651 = vrot.lane.b32.xlu0 %v225, 126
          %v652 = vpop.permute.xlu0 %651
          %653 = vrot.lane.b32.xlu0 %v226, 126
          %v654 = vpop.permute.xlu0 %653
          %655 = vrot.lane.b32.xlu0 %v227, 126
          %v656 = vpop.permute.xlu0 %655
          %657 = vrot.lane.b32.xlu0 %v228, 126
          %v658 = vpop.permute.xlu0 %657
          %659 = vrot.lane.b32.xlu0 %v229, 126
          %v660 = vpop.permute.xlu0 %659
          %661 = vrot.lane.b32.xlu0 %v230, 126
          %v662 = vpop.permute.xlu0 %661
          %663 = vrot.lane.b32.xlu0 %v231, 126
          %v664 = vpop.permute.xlu0 %663
          %vm673 = vcmask 113664
          %v674 = vsel %vm673, %v650, %v612
          %v675 = vsel %vm673, %v652, %v617
          %v676 = vsel %vm673, %v654, %v622
          %v677 = vsel %vm673, %v656, %v627
          %v678 = vsel %vm673, %v658, %v632
          %v679 = vsel %vm673, %v660, %v637
          %v680 = vsel %vm673, %v662, %v642
          %v681 = vsel %vm673, %v664, %v647
          %682 = vst.msk [vmem:[%s139] sm:$0xff] %vm165, %v674
          %683 = vst.msk [vmem:[%s139 + $0x8] sm:$0xff] %vm165, %v675
          %684 = vst.msk [vmem:[%s139 + $0x10] sm:$0xff] %vm165, %v676
          %685 = vst.msk [vmem:[%s139 + $0x18] sm:$0xff] %vm165, %v677
          %686 = vst.msk [vmem:[%s139 + $0x20] sm:$0xff] %vm165, %v678
          %687 = vst.msk [vmem:[%s139 + $0x28] sm:$0xff] %vm165, %v679
          %688 = vst.msk [vmem:[%s139 + $0x30] sm:$0xff] %vm165, %v680
          %689 = vst.msk [vmem:[%s139 + $0x38] sm:$0xff] %vm165, %v681
        $region56: #{tpu_custom_call.1} parent=23 // pred_fallthru
          _
        %p690 = scmp.eq.s32.totalorder %s144, 7
        // Predicated region
        $region57: #{tpu_custom_call.1} parent=23 // pred_check
          %p691 = pneg %p690
        $region58: #{tpu_custom_call.1} parent=23 // pred_check_branch
          %693 = sbr.rel (%p691) target = $region60
        $region59: #{tpu_custom_call.1} parent=23 // pred_region
          %695 = vset.pattern.permute.xlu0 15
          %696 = vperm.xlu0 %695, %v224
          %v697 = vpop.permute.xlu0 %696
          %700 = vset.pattern.permute.xlu0 15
          %701 = vperm.xlu0 %700, %v225
          %v702 = vpop.permute.xlu0 %701
          %705 = vset.pattern.permute.xlu0 15
          %706 = vperm.xlu0 %705, %v226
          %v707 = vpop.permute.xlu0 %706
          %710 = vset.pattern.permute.xlu0 15
          %711 = vperm.xlu0 %710, %v227
          %v712 = vpop.permute.xlu0 %711
          %715 = vset.pattern.permute.xlu0 15
          %716 = vperm.xlu0 %715, %v228
          %v717 = vpop.permute.xlu0 %716
          %720 = vset.pattern.permute.xlu0 15
          %721 = vperm.xlu0 %720, %v229
          %v722 = vpop.permute.xlu0 %721
          %725 = vset.pattern.permute.xlu0 15
          %726 = vperm.xlu0 %725, %v230
          %v727 = vpop.permute.xlu0 %726
          %730 = vset.pattern.permute.xlu0 15
          %731 = vperm.xlu0 %730, %v231
          %v732 = vpop.permute.xlu0 %731
          %734 = vrot.lane.b32.xlu0 %v224, 125
          %v735 = vpop.permute.xlu0 %734
          %736 = vrot.lane.b32.xlu0 %v225, 125
          %v737 = vpop.permute.xlu0 %736
          %738 = vrot.lane.b32.xlu0 %v226, 125
          %v739 = vpop.permute.xlu0 %738
          %740 = vrot.lane.b32.xlu0 %v227, 125
          %v741 = vpop.permute.xlu0 %740
          %742 = vrot.lane.b32.xlu0 %v228, 125
          %v743 = vpop.permute.xlu0 %742
          %744 = vrot.lane.b32.xlu0 %v229, 125
          %v745 = vpop.permute.xlu0 %744
          %746 = vrot.lane.b32.xlu0 %v230, 125
          %v747 = vpop.permute.xlu0 %746
          %748 = vrot.lane.b32.xlu0 %v231, 125
          %v749 = vpop.permute.xlu0 %748
          %vm758 = vcmask 105472
          %v759 = vsel %vm758, %v735, %v697
          %v760 = vsel %vm758, %v737, %v702
          %v761 = vsel %vm758, %v739, %v707
          %v762 = vsel %vm758, %v741, %v712
          %v763 = vsel %vm758, %v743, %v717
          %v764 = vsel %vm758, %v745, %v722
          %v765 = vsel %vm758, %v747, %v727
          %v766 = vsel %vm758, %v749, %v732
          %767 = vst.msk [vmem:[%s139] sm:$0xff] %vm165, %v759
          %768 = vst.msk [vmem:[%s139 + $0x8] sm:$0xff] %vm165, %v760
          %769 = vst.msk [vmem:[%s139 + $0x10] sm:$0xff] %vm165, %v761
          %770 = vst.msk [vmem:[%s139 + $0x18] sm:$0xff] %vm165, %v762
          %771 = vst.msk [vmem:[%s139 + $0x20] sm:$0xff] %vm165, %v763
          %772 = vst.msk [vmem:[%s139 + $0x28] sm:$0xff] %vm165, %v764
          %773 = vst.msk [vmem:[%s139 + $0x30] sm:$0xff] %vm165, %v765
          %774 = vst.msk [vmem:[%s139 + $0x38] sm:$0xff] %vm165, %v766
        $region60: #{tpu_custom_call.1} parent=23 // pred_fallthru
          _
        %p775 = scmp.eq.s32.totalorder %s144, 8
        // Predicated region
        $region61: #{tpu_custom_call.1} parent=23 // pred_check
          %p776 = pneg %p775
        $region62: #{tpu_custom_call.1} parent=23 // pred_check_branch
          %778 = sbr.rel (%p776) target = $region64
        $region63: #{tpu_custom_call.1} parent=23 // pred_region
          %780 = vset.pattern.permute.xlu0 15
          %781 = vperm.xlu0 %780, %v224
          %v782 = vpop.permute.xlu0 %781
          %785 = vset.pattern.permute.xlu0 15
          %786 = vperm.xlu0 %785, %v225
          %v787 = vpop.permute.xlu0 %786
          %790 = vset.pattern.permute.xlu0 15
          %791 = vperm.xlu0 %790, %v226
          %v792 = vpop.permute.xlu0 %791
          %795 = vset.pattern.permute.xlu0 15
          %796 = vperm.xlu0 %795, %v227
          %v797 = vpop.permute.xlu0 %796
          %800 = vset.pattern.permute.xlu0 15
          %801 = vperm.xlu0 %800, %v228
          %v802 = vpop.permute.xlu0 %801
          %805 = vset.pattern.permute.xlu0 15
          %806 = vperm.xlu0 %805, %v229
          %v807 = vpop.permute.xlu0 %806
          %810 = vset.pattern.permute.xlu0 15
          %811 = vperm.xlu0 %810, %v230
          %v812 = vpop.permute.xlu0 %811
          %815 = vset.pattern.permute.xlu0 15
          %816 = vperm.xlu0 %815, %v231
          %v817 = vpop.permute.xlu0 %816
          %819 = vrot.lane.b32.xlu0 %v224, 124
          %v820 = vpop.permute.xlu0 %819
          %821 = vrot.lane.b32.xlu0 %v225, 124
          %v822 = vpop.permute.xlu0 %821
          %823 = vrot.lane.b32.xlu0 %v226, 124
          %v824 = vpop.permute.xlu0 %823
          %825 = vrot.lane.b32.xlu0 %v227, 124
          %v826 = vpop.permute.xlu0 %825
          %827 = vrot.lane.b32.xlu0 %v228, 124
          %v828 = vpop.permute.xlu0 %827
          %829 = vrot.lane.b32.xlu0 %v229, 124
          %v830 = vpop.permute.xlu0 %829
          %831 = vrot.lane.b32.xlu0 %v230, 124
          %v832 = vpop.permute.xlu0 %831
          %833 = vrot.lane.b32.xlu0 %v231, 124
          %v834 = vpop.permute.xlu0 %833
          %vm843 = vcmask 97280
          %v844 = vsel %vm843, %v820, %v782
          %v845 = vsel %vm843, %v822, %v787
          %v846 = vsel %vm843, %v824, %v792
          %v847 = vsel %vm843, %v826, %v797
          %v848 = vsel %vm843, %v828, %v802
          %v849 = vsel %vm843, %v830, %v807
          %v850 = vsel %vm843, %v832, %v812
          %v851 = vsel %vm843, %v834, %v817
          %852 = vst.msk [vmem:[%s139] sm:$0xff] %vm165, %v844
          %853 = vst.msk [vmem:[%s139 + $0x8] sm:$0xff] %vm165, %v845
          %854 = vst.msk [vmem:[%s139 + $0x10] sm:$0xff] %vm165, %v846
          %855 = vst.msk [vmem:[%s139 + $0x18] sm:$0xff] %vm165, %v847
          %856 = vst.msk [vmem:[%s139 + $0x20] sm:$0xff] %vm165, %v848
          %857 = vst.msk [vmem:[%s139 + $0x28] sm:$0xff] %vm165, %v849
          %858 = vst.msk [vmem:[%s139 + $0x30] sm:$0xff] %vm165, %v850
          %859 = vst.msk [vmem:[%s139 + $0x38] sm:$0xff] %vm165, %v851
        $region64: #{tpu_custom_call.1} parent=23 // pred_fallthru
          _
        %s860 = sand.u32 %s57, 1
        %s861 = scalar_lea.sflag [#allocation7], %s860
        %s862 = sand.u32 %s57, 1
        %s863 = smul.addr %s862, 64
        %s864 = scalar_lea.vmem [#allocation8], %s863
        // Predicated region
        $region65: #{tpu_custom_call.1} parent=23 // pred_check
          %p865 = pneg %p67
        $region66: #{tpu_custom_call.1} parent=23 // pred_check_branch
          %867 = sbr.rel (%p865) target = $region68
        $region67: #{tpu_custom_call.1} parent=23 // pred_region
          %s869 = ssub.s32 1024, 1024
          %870 = vsyncadd %s861, %s869
          %s871 = smul.addr %s23, 8
          %s872 = smul.addr %s871, 128
          %s873 = scalar_lea.hbm %s2, %s872
          %s874 = sshll.u32 %s864, 4
          %s875 = int_to_ptr.vmem [resolvable:$true] %s874
          %880 = dma.vmem_to_hbm [thread:$0]  %s875, 1024, %s873, %s861, 128, 128, 8
        $region68: #{tpu_custom_call.1} parent=23 // pred_fallthru
          _
      $region24: #{tpu_custom_call.1} parent=5 // pred_fallthru
        _
      %p881 = scmp.le.s32.totalorder 2, %s18
      // Predicated region
      $region69: #{tpu_custom_call.1} parent=5 // pred_check
        %p882 = pneg %p881
      $region70: #{tpu_custom_call.1} parent=5 // pred_check_branch
        %884 = sbr.rel (%p882) target = $region72
      $region71: #{tpu_custom_call.1} parent=5 // pred_region
        %s885 = ssub.s32 %s18, 2
        // Predicated region
        $region73: #{tpu_custom_call.1} parent=71 // pred_check
          %p886 = pneg %p73
        $region74: #{tpu_custom_call.1} parent=71 // pred_check_branch
          %888 = sbr.rel (%p886) target = $region76
        $region75: #{tpu_custom_call.1} parent=71 // pred_region
          %s889 = sand.u32 %s58, 1
          %s890 = scalar_lea.sflag [#allocation7], %s889
          %s891 = sand.u32 %s58, 1
          %s892 = smul.addr %s891, 64
          %s893 = scalar_lea.vmem [#allocation8], %s892
          %894 = dma.done %s890, 1024
        $region76: #{tpu_custom_call.1} parent=71 // pred_fallthru
          _
      $region72: #{tpu_custom_call.1} parent=5 // pred_fallthru
        _
    $region6: #{tpu_custom_call.1} parent=1 // loop_footer
      %s22 = sadd.s32 1, %s18
    $region7: #{tpu_custom_call.1} parent=1 // loop_footer_branch
      %17 = sbr.rel target = $region3
    $region8: #{tpu_custom_call.1} parent=1 // loop_exit
      _
    %895 = vsyncpa [#allocation6], 1
    %s896 = scalar_lea.sflag [#allocation6], 1
    %897 = vsyncpa %s896, 1
    %898 = vsyncpa [#allocation7], 1
    %s899 = scalar_lea.sflag [#allocation7], 1
    %900 = vsyncpa %s899, 1

</llo_original>
